<compile_context>
chip_gen: v7x
topology: tpu7x:2x2x1
jax: 0.10.0
libtpu: 0.0.40
codegen_flags: <defaults>
</compile_context>

<pallas_src>
import functools

import numpy as np
import jax
import jax.numpy as jnp
from jax import lax
from jax.experimental import pallas as pl
from jax.experimental.pallas import tpu as pltpu


HIDDEN = 64        # default net_arch hidden width for both pi and vf
FUSED = 128        # actor(64) + critic(64) fused hidden lanes
OUT_LANES = 128    # lane-dense packed output slab width
LSE_LANE = 125     # logsumexp(logits)
ENT_LANE = 126     # entropy
VAL_LANE = 127     # critic value


def _round_up(n, m):
    return ((n + m - 1) // m) * m


# ----------------------------------------------------------------------------- #
# Deterministic parameter init (CleanRL-style orthogonal init, torch semantics)
# ----------------------------------------------------------------------------- #
def _orthogonal(rng, out_dim, in_dim, gain):
    """Mimics torch.nn.init.orthogonal_ on a (out_dim, in_dim) weight."""
    a = rng.standard_normal((out_dim, in_dim)).astype(np.float32)
    rows, cols = a.shape
    flat = a if rows >= cols else a.T
    q, r = np.linalg.qr(flat)
    d = np.sign(np.diag(r))
    q = q * d[np.newaxis, :]
    if rows < cols:
        q = q.T
    return (gain * q).astype(np.float32)


def layer_init_params(rng, in_dim, out_dim, std=np.sqrt(2), bias_const=0.0):
    w = _orthogonal(rng, out_dim, in_dim, std)        # torch shape (out, in)
    b = np.full((out_dim,), bias_const, np.float32)
    return w, b


# ----------------------------------------------------------------------------- #
# One-time parameter packing (hoisted out of the hot path)
# ----------------------------------------------------------------------------- #
def pack_params(actor_params, critic_params, obs_dim, n_repeats, act_dim):
    """Pack actor+critic MLP params into fused lane-dense bf16 matrices,
    folding the OutputReuse tiling into W1."""
    assert act_dim <= LSE_LANE, "act_dim too large for packed output layout"
    input_dim = obs_dim * n_repeats
    (aw1, ab1), (aw2, ab2), (aw3, ab3) = actor_params
    (cw1, cb1), (cw2, cb2), (cw3, cb3) = critic_params

    w1 = np.zeros((input_dim, FUSED), np.float32)
    w1[:, :HIDDEN] = aw1.T
    w1[:, HIDDEN:] = cw1.T
    # Fold OutputReuse: tiled x @ W1 == obs @ (sum of n_repeats row blocks).
    w1 = w1.reshape(n_repeats, obs_dim, FUSED).sum(axis=0)
    # Pad the contracting dim to a sublane multiple (zeros are harmless).
    k_dim = max(8, _round_up(obs_dim, 8))
    if k_dim != obs_dim:
        w1 = np.concatenate(
            [w1, np.zeros((k_dim - obs_dim, FUSED), np.float32)], axis=0)

    w2 = np.zeros((FUSED, FUSED), np.float32)
    w2[:HIDDEN, :HIDDEN] = aw2.T
    w2[HIDDEN:, HIDDEN:] = cw2.T

    w3 = np.zeros((FUSED, OUT_LANES), np.float32)
    w3[:HIDDEN, :act_dim] = aw3.T
    w3[HIDDEN:, VAL_LANE:VAL_LANE + 1] = cw3.T

    b = np.zeros((8, OUT_LANES), np.float32)          # 8 sublanes, one DMA
    b[0, :HIDDEN] = ab1
    b[0, HIDDEN:] = cb1
    b[1, :HIDDEN] = ab2
    b[1, HIDDEN:] = cb2
    b[2, :act_dim] = ab3
    b[2, VAL_LANE] = cb3[0]

    return (jnp.asarray(w1, dtype=jnp.bfloat16),
            jnp.asarray(w2, dtype=jnp.bfloat16),
            jnp.asarray(w3, dtype=jnp.bfloat16),
            jnp.asarray(b))                            # bias slab stays f32


# ----------------------------------------------------------------------------- #
# Pallas kernel: fused actor + critic MLP forward + categorical stats
# ----------------------------------------------------------------------------- #
def agent_kernel(act_dim, x_ref, w1_ref, w2_ref, w3_ref, b_ref, out_ref):
    b = b_ref[...]                                    # (8, 128) f32 bias slab

    # Fused actor|critic MLP: bf16 MXU operands, f32 accumulation.
    h = jnp.dot(x_ref[...], w1_ref[...],
                preferred_element_type=jnp.float32) + b[0:1, :]
    h = jnp.maximum(h, 0.0).astype(jnp.bfloat16)
    h = jnp.dot(h, w2_ref[...],
                preferred_element_type=jnp.float32) + b[1:2, :]
    h = jnp.maximum(h, 0.0).astype(jnp.bfloat16)
    y = jnp.dot(h, w3_ref[...],
                preferred_element_type=jnp.float32) + b[2:3, :]
    # y lanes: [0, act_dim) = actor logits, lane VAL_LANE = critic value,
    # every other lane is exactly 0 (zero-packed W3 columns, zero bias).

    lane = lax.broadcasted_iota(jnp.int32, y.shape, 1)
    is_logit = lane < act_dim

    # Masked log-softmax over the real logit lanes only (f32 epilogue).
    logits = jnp.where(is_logit, y, jnp.float32(-1e30))
    m = jnp.max(logits, axis=-1, keepdims=True)
    z = logits - m
    ez = jnp.where(is_logit, jnp.exp(z), 0.0)
    s = jnp.sum(ez, axis=-1, keepdims=True)
    log_s = jnp.log(s)
    lse = m + log_s                                   # logsumexp(logits)
    inv_s = pl.reciprocal(s, approx=True)             # EUP slot, ~free
    p = ez * inv_s
    logp = z - log_s
    ent = -jnp.sum(jnp.where(is_logit, p * logp, 0.0), axis=-1, keepdims=True)

    # Lane-dense output slab: y already holds logits / value / zeros,
    # only splice logsumexp and entropy into their dedicated lanes.
    slab = jnp.where(lane == LSE_LANE, lse, y)
    slab = jnp.where(lane == ENT_LANE, ent, slab)
    out_ref[...] = slab


def _choose_blocking(batch):
    """Pick (block_b, padded_b). Large blocks amortise the ~0.35us per-step
    cost; keep >=2 grid steps once the padded batch reaches 512 so v7x's two
    TensorCores both get work (costs nothing on v5e/v6e)."""
    if batch <= 256:
        block_b = max(16, _round_up(batch, 16))
        return block_b, block_b
    if batch <= 1024:
        padded_b = _round_up(batch, 512)
        return padded_b // 2, padded_b                # 2 grid steps of 256/512 rows
    block_b = 512
    return block_b, _round_up(batch, block_b)


def run_agent_forward(obs, packed, act_dim):
    """obs: (B, obs_dim) float32. Returns (logits, lse, entropy, value)."""
    B, in_dim = obs.shape
    w1, w2, w3, b = packed
    k_dim = w1.shape[0]                               # padded contracting dim
    block_b, padded_b = _choose_blocking(B)

    x = obs
    if padded_b != B or k_dim != in_dim:
        x = jnp.pad(x, ((0, padded_b - B), (0, k_dim - in_dim)))
    x = x.astype(jnp.bfloat16)

    grid = (padded_b // block_b,)
    flops = 2 * padded_b * (k_dim * FUSED + FUSED * FUSED + FUSED * OUT_LANES)
    bytes_accessed = (padded_b * k_dim * 2 + padded_b * OUT_LANES * 4
                      + (w1.size + w2.size + w3.size) * 2 + b.size * 4)
    transcendentals = padded_b * OUT_LANES            # exp/log in masked softmax

    slab = pl.pallas_call(
        functools.partial(agent_kernel, act_dim),
        out_shape=jax.ShapeDtypeStruct((padded_b, OUT_LANES), jnp.float32),
        grid=grid,
        in_specs=[
            pl.BlockSpec((block_b, k_dim), lambda i: (i, 0)),
            pl.BlockSpec(w1.shape, lambda i: (0, 0)),   # weights resident
            pl.BlockSpec(w2.shape, lambda i: (0, 0)),
            pl.BlockSpec(w3.shape, lambda i: (0, 0)),
            pl.BlockSpec(b.shape, lambda i: (0, 0)),
        ],
        out_specs=pl.BlockSpec((block_b, OUT_LANES), lambda i: (i, 0)),
        compiler_params=pltpu.CompilerParams(
            dimension_semantics=("parallel",)),
        cost_estimate=pl.CostEstimate(
            flops=int(flops),
            transcendentals=int(transcendentals),
            bytes_accessed=int(bytes_accessed)),
    )(x, w1, w2, w3, b)

    slab = slab[:B]
    logits = slab[:, :act_dim]
    lse = slab[:, LSE_LANE]
    entropy = slab[:, ENT_LANE]
    value = slab[:, VAL_LANE:VAL_LANE + 1]
    return logits, lse, entropy, value


@functools.partial(jax.jit, static_argnames=("act_dim",))
def get_action_and_value(obs, packed, sample_key, *, act_dim, action=None):
    """Mirrors ClassicalAgent.get_action_and_value.

    OutputReuse is folded into W1 at pack time, so raw obs is fed directly."""
    logits, lse, entropy, value = run_agent_forward(obs, packed, act_dim)
    if action is None:
        action = jax.random.categorical(sample_key, logits, axis=-1)
    log_prob = jnp.take_along_axis(logits, action[:, None], axis=1)[:, 0] - lse
    return action, log_prob, entropy, value


# ----------------------------------------------------------------------------- #
# Main
# ----------------------------------------------------------------------------- #
if __name__ == "__main__":
    # Config consistent with ClassicalAgent defaults (actor-critic, ReLU, 64-64)
    obs_dim = 4
    act_dim = 2
    n_repeats = 2            # OutputReuse: x.repeat(1, n_repeats)
    input_dim = obs_dim * n_repeats
    pi_arch = [64, 64]
    vf_arch = [64, 64]
    batch = 4

    # Deterministic parameter init (orthogonal, like layer_init in CleanRL)
    rng = np.random.default_rng(0)

    def build_mlp(arch, in_dim, out_dim, last_std):
        params, prev = [], in_dim
        for h in arch:
            params.append(layer_init_params(rng, prev, h, std=np.sqrt(2)))
            prev = h
        params.append(layer_init_params(rng, prev, out_dim, std=last_std))
        return params

    critic_params = build_mlp(vf_arch, input_dim, 1, last_std=1.0)
    actor_params = build_mlp(pi_arch, input_dim, act_dim, last_std=0.01)

    # One-time packing (OutputReuse fold + bf16 cast, hoisted out of hot path).
    packed = pack_params(actor_params, critic_params, obs_dim, n_repeats, act_dim)

    key = jax.random.PRNGKey(0)
    k_obs, k_sample, k_obs2, k_sample2 = jax.random.split(key, 4)
    obs = jax.random.normal(k_obs, (batch, obs_dim), dtype=jnp.float32)

    action, log_prob, entropy, value = get_action_and_value(
        obs, packed, k_sample, act_dim=act_dim)
    jax.block_until_ready((action, log_prob, entropy, value))

    # ---- Pure-JAX f32 reference of the same math (OutputReuse explicit) ----
    def ref_forward(o):
        x = jnp.tile(o, (1, n_repeats))

        def mlp(xv, params):
            h = xv
            for i, (w, bb) in enumerate(params):
                h = h @ jnp.asarray(w).T + jnp.asarray(bb)
                if i < len(params) - 1:
                    h = jnp.maximum(h, 0.0)
            return h

        logits = mlp(x, actor_params)
        val = mlp(x, critic_params)
        m = jnp.max(logits, axis=-1, keepdims=True)
        lse = (m + jnp.log(jnp.sum(jnp.exp(logits - m), axis=-1,
                                   keepdims=True)))[:, 0]
        logp = logits - lse[:, None]
        p = jnp.exp(logp)
        ent = -jnp.sum(p * logp, axis=-1)
        return logits, lse, ent, val

    tol = dict(atol=2e-2, rtol=1e-2)     # bf16 operands, f32 accumulation

    logits_ref, lse_ref, ent_ref, value_ref = ref_forward(obs)
    logits_k, lse_k, ent_k, value_k = run_agent_forward(obs, packed, act_dim)
    logprob_chosen_ref = jnp.take_along_axis(
        logits_ref - lse_ref[:, None], action[:, None], axis=1)[:, 0]

    assert np.allclose(np.asarray(logits_k), np.asarray(logits_ref), **tol)
    assert np.allclose(np.asarray(value_k), np.asarray(value_ref), **tol)
    assert np.allclose(np.asarray(lse_k), np.asarray(lse_ref), **tol)
    assert np.allclose(np.asarray(ent_k), np.asarray(ent_ref), **tol)
    assert np.allclose(np.asarray(log_prob), np.asarray(logprob_chosen_ref), **tol)
    assert action.shape == (batch,)
    assert log_prob.shape == (batch,)
    assert entropy.shape == (batch,)
    assert value.shape == (batch, 1)

    # ---- Exercise the multi-block (>=2 grid steps) path as well ----
    big_b = 300
    obs_big = jax.random.normal(k_obs2, (big_b, obs_dim), dtype=jnp.float32)
    a2, lp2, e2, v2 = get_action_and_value(
        obs_big, packed, k_sample2, act_dim=act_dim)
    jax.block_until_ready((a2, lp2, e2, v2))

    lg_ref2, lse_ref2, ent_ref2, val_ref2 = ref_forward(obs_big)
    lg_k2, lse_k2, ent_k2, val_k2 = run_agent_forward(obs_big, packed, act_dim)
    assert np.allclose(np.asarray(lg_k2), np.asarray(lg_ref2), **tol)
    assert np.allclose(np.asarray(val_k2), np.asarray(val_ref2), **tol)
    assert np.allclose(np.asarray(ent_k2), np.asarray(ent_ref2), **tol)
    assert a2.shape == (big_b,) and v2.shape == (big_b, 1)

    print("KERNEL_OK")
</pallas_src>

<mosaic_0001>
module attributes {stable_mosaic.version = 11 : i64} {
  func.func @agent_kernel(%arg0: i32, %arg1: memref<16x8xbf16, #tpu.memory_space<vmem>>, %arg2: memref<8x128xbf16, #tpu.memory_space<vmem>>, %arg3: memref<128x128xbf16, #tpu.memory_space<vmem>>, %arg4: memref<128x128xbf16, #tpu.memory_space<vmem>>, %arg5: memref<8x128xf32, #tpu.memory_space<vmem>>, %arg6: memref<16x128xf32, #tpu.memory_space<vmem>>) attributes {dimension_semantics = [#tpu.dimension_semantics<parallel>], iteration_bounds = array<i64: 1>, scalar_prefetch = 0 : i64, scratch_operands = 0 : i64, tpu.core_type = #tpu.core_type<tc>, window_params = [{transform_indices = @transform_0, window_bounds = array<i64: 16, 8>}, {pipeline_mode = #tpu.pipeline_mode<synchronous>, transform_indices = @transform_1, window_bounds = array<i64: 8, 128>}, {pipeline_mode = #tpu.pipeline_mode<synchronous>, transform_indices = @transform_2, window_bounds = array<i64: 128, 128>}, {pipeline_mode = #tpu.pipeline_mode<synchronous>, transform_indices = @transform_3, window_bounds = array<i64: 128, 128>}, {pipeline_mode = #tpu.pipeline_mode<synchronous>, transform_indices = @transform_4, window_bounds = array<i64: 8, 128>}, {transform_indices = @transform_5, window_bounds = array<i64: 16, 128>}]} {
    %c0 = arith.constant 0 : index
    %c0_0 = arith.constant 0 : index
    %0 = vector.load %arg5[%c0, %c0_0] : memref<8x128xf32, #tpu.memory_space<vmem>>, vector<8x128xf32>
    %c0_1 = arith.constant 0 : index
    %c0_2 = arith.constant 0 : index
    %1 = vector.load %arg1[%c0_1, %c0_2] : memref<16x8xbf16, #tpu.memory_space<vmem>>, vector<16x8xbf16>
    %c0_3 = arith.constant 0 : index
    %c0_4 = arith.constant 0 : index
    %2 = vector.load %arg2[%c0_3, %c0_4] : memref<8x128xbf16, #tpu.memory_space<vmem>>, vector<8x128xbf16>
    %cst = arith.constant dense<0.000000e+00> : vector<16x128xf32>
    %3 = tpu.matmul %1, %2, %cst {dimension_numbers = #tpu.dot_dimension_numbers<[1], [0], [0], [1], [0, 0, 1, 1], [], []>} : vector<16x8xbf16>, vector<8x128xbf16>, vector<16x128xf32> -> vector<16x128xf32>
    %4 = vector.extract_strided_slice %0 {offsets = [0, 0], sizes = [1, 128], strides = [1, 1]} : vector<8x128xf32> to vector<1x128xf32>
    %5 = vector.broadcast %4 : vector<1x128xf32> to vector<16x128xf32>
    %6 = arith.addf %3, %5 : vector<16x128xf32>
    %cst_5 = arith.constant 0.000000e+00 : f32
    %7 = vector.broadcast %cst_5 : f32 to vector<16x128xf32>
    %8 = arith.maximumf %6, %7 : vector<16x128xf32>
    %9 = arith.truncf %8 : vector<16x128xf32> to vector<16x128xbf16>
    %c0_6 = arith.constant 0 : index
    %c0_7 = arith.constant 0 : index
    %10 = vector.load %arg3[%c0_6, %c0_7] : memref<128x128xbf16, #tpu.memory_space<vmem>>, vector<128x128xbf16>
    %cst_8 = arith.constant dense<0.000000e+00> : vector<16x128xf32>
    %11 = tpu.matmul %9, %10, %cst_8 {dimension_numbers = #tpu.dot_dimension_numbers<[1], [0], [0], [1], [0, 0, 1, 1], [], []>} : vector<16x128xbf16>, vector<128x128xbf16>, vector<16x128xf32> -> vector<16x128xf32>
    %12 = vector.extract_strided_slice %0 {offsets = [1, 0], sizes = [1, 128], strides = [1, 1]} : vector<8x128xf32> to vector<1x128xf32>
    %13 = vector.broadcast %12 : vector<1x128xf32> to vector<16x128xf32>
    %14 = arith.addf %11, %13 : vector<16x128xf32>
    %cst_9 = arith.constant 0.000000e+00 : f32
    %15 = vector.broadcast %cst_9 : f32 to vector<16x128xf32>
    %16 = arith.maximumf %14, %15 : vector<16x128xf32>
    %17 = arith.truncf %16 : vector<16x128xf32> to vector<16x128xbf16>
    %c0_10 = arith.constant 0 : index
    %c0_11 = arith.constant 0 : index
    %18 = vector.load %arg4[%c0_10, %c0_11] : memref<128x128xbf16, #tpu.memory_space<vmem>>, vector<128x128xbf16>
    %cst_12 = arith.constant dense<0.000000e+00> : vector<16x128xf32>
    %19 = tpu.matmul %17, %18, %cst_12 {dimension_numbers = #tpu.dot_dimension_numbers<[1], [0], [0], [1], [0, 0, 1, 1], [], []>} : vector<16x128xbf16>, vector<128x128xbf16>, vector<16x128xf32> -> vector<16x128xf32>
    %20 = vector.extract_strided_slice %0 {offsets = [2, 0], sizes = [1, 128], strides = [1, 1]} : vector<8x128xf32> to vector<1x128xf32>
    %21 = vector.broadcast %20 : vector<1x128xf32> to vector<16x128xf32>
    %22 = arith.addf %19, %21 : vector<16x128xf32>
    %23 = tpu.iota {dimensions = array<i32: 1>} : vector<16x128xi32>
    %c2_i32 = arith.constant 2 : i32
    %24 = vector.broadcast %c2_i32 : i32 to vector<16x128xi32>
    %25 = arith.cmpi slt, %23, %24 : vector<16x128xi32>
    %cst_13 = arith.constant -1.000000e+30 : f32
    %26 = vector.broadcast %cst_13 : f32 to vector<16x128xf32>
    %27 = arith.select %25, %22, %26 : vector<16x128xi1>, vector<16x128xf32>
    %cst_14 = arith.constant dense<0xFF800000> : vector<16xf32>
    %28 = vector.multi_reduction <maximumf>, %27, %cst_14 [1] : vector<16x128xf32> to vector<16xf32>
    %29 = vector.shape_cast %28 : vector<16xf32> to vector<16x1xf32>
    %30 = vector.broadcast %29 : vector<16x1xf32> to vector<16x128xf32>
    %31 = arith.subf %27, %30 : vector<16x128xf32>
    %32 = math.exp %31 : vector<16x128xf32>
    %cst_15 = arith.constant 0.000000e+00 : f32
    %33 = vector.broadcast %cst_15 : f32 to vector<16x128xf32>
    %34 = arith.select %25, %32, %33 : vector<16x128xi1>, vector<16x128xf32>
    %cst_16 = arith.constant dense<0.000000e+00> : vector<16xf32>
    %35 = vector.multi_reduction <add>, %34, %cst_16 [1] : vector<16x128xf32> to vector<16xf32>
    %36 = vector.shape_cast %35 : vector<16xf32> to vector<16x1xf32>
    %37 = math.log %36 : vector<16x1xf32>
    %38 = arith.addf %29, %37 : vector<16x1xf32>
    %39 = tpu.reciprocal %36 {approx = true} : vector<16x1xf32> -> vector<16x1xf32>
    %40 = vector.broadcast %39 : vector<16x1xf32> to vector<16x128xf32>
    %41 = arith.mulf %34, %40 : vector<16x128xf32>
    %42 = vector.broadcast %37 : vector<16x1xf32> to vector<16x128xf32>
    %43 = arith.subf %31, %42 : vector<16x128xf32>
    %44 = arith.mulf %41, %43 : vector<16x128xf32>
    %cst_17 = arith.constant 0.000000e+00 : f32
    %45 = vector.broadcast %cst_17 : f32 to vector<16x128xf32>
    %46 = arith.select %25, %44, %45 : vector<16x128xi1>, vector<16x128xf32>
    %cst_18 = arith.constant dense<0.000000e+00> : vector<16xf32>
    %47 = vector.multi_reduction <add>, %46, %cst_18 [1] : vector<16x128xf32> to vector<16xf32>
    %48 = vector.shape_cast %47 : vector<16xf32> to vector<16x1xf32>
    %cst_19 = arith.constant 0.000000e+00 : f32
    %49 = vector.broadcast %cst_19 : f32 to vector<16x1xf32>
    %50 = arith.subf %49, %48 : vector<16x1xf32>
    %c125_i32 = arith.constant 125 : i32
    %51 = vector.broadcast %c125_i32 : i32 to vector<16x128xi32>
    %52 = arith.cmpi eq, %23, %51 : vector<16x128xi32>
    %53 = vector.shape_cast %38 : vector<16x1xf32> to vector<16x1xf32>
    %54 = vector.broadcast %53 : vector<16x1xf32> to vector<16x128xf32>
    %55 = arith.select %52, %54, %22 : vector<16x128xi1>, vector<16x128xf32>
    %c126_i32 = arith.constant 126 : i32
    %56 = vector.broadcast %c126_i32 : i32 to vector<16x128xi32>
    %57 = arith.cmpi eq, %23, %56 : vector<16x128xi32>
    %58 = vector.shape_cast %50 : vector<16x1xf32> to vector<16x1xf32>
    %59 = vector.broadcast %58 : vector<16x1xf32> to vector<16x128xf32>
    %60 = arith.select %57, %59, %55 : vector<16x128xi1>, vector<16x128xf32>
    %c0_20 = arith.constant 0 : index
    %c0_21 = arith.constant 0 : index
    %61 = vector.load %arg6[%c0_20, %c0_21] : memref<16x128xf32, #tpu.memory_space<vmem>>, vector<16x128xf32>
    tpu.vector_store %arg6[%c0_20, %c0_21], %60 {strides = array<i32>} : memref<16x128xf32, #tpu.memory_space<vmem>>, vector<16x128xf32>,
    return
  }
  func.func @transform_0(%arg0: i32) -> (i32, i32) {
    %c0_i32 = arith.constant 0 : i32
    %c0_i32_0 = arith.constant 0 : i32
    return %arg0, %c0_i32 : i32, i32
  }
  func.func @transform_1(%arg0: i32) -> (i32, i32) {
    %c0_i32 = arith.constant 0 : i32
    %c0_i32_0 = arith.constant 0 : i32
    %c0_i32_1 = arith.constant 0 : i32
    return %c0_i32, %c0_i32_0 : i32, i32
  }
  func.func @transform_2(%arg0: i32) -> (i32, i32) {
    %c0_i32 = arith.constant 0 : i32
    %c0_i32_0 = arith.constant 0 : i32
    %c0_i32_1 = arith.constant 0 : i32
    return %c0_i32, %c0_i32_0 : i32, i32
  }
  func.func @transform_3(%arg0: i32) -> (i32, i32) {
    %c0_i32 = arith.constant 0 : i32
    %c0_i32_0 = arith.constant 0 : i32
    %c0_i32_1 = arith.constant 0 : i32
    return %c0_i32, %c0_i32_0 : i32, i32
  }
  func.func @transform_4(%arg0: i32) -> (i32, i32) {
    %c0_i32 = arith.constant 0 : i32
    %c0_i32_0 = arith.constant 0 : i32
    %c0_i32_1 = arith.constant 0 : i32
    return %c0_i32, %c0_i32_0 : i32, i32
  }
  func.func @transform_5(%arg0: i32) -> (i32, i32) {
    %c0_i32 = arith.constant 0 : i32
    %c0_i32_0 = arith.constant 0 : i32
    return %arg0, %c0_i32 : i32, i32
  }
}

</mosaic_0001>

<llo_original>
// kernel: get_action_and_value.1
$region0: #{get_action_and_value.1}
  #allocation0 [shape = 'u32[]', space=smem, size = 0x4, offset = 0x4, fixed_abs, tag = 'smem constant byte address 0x4 - core index']
  #allocation1 [shape = 'u32[144,128]{1,0:T(1,128)}', space=vmem, size = 0x12000, scoped, tag = 'internal scratch']
  %s0 = inlined_call_operand.vmem [shape: bf16[16,8], index: 0, kind: input, shape index: {}]
  %s1 = inlined_call_operand.vmem [shape: bf16[8,128], index: 1, kind: input, shape index: {}]
  %s2 = inlined_call_operand.hbm [shape: bf16[128,128], index: 2, kind: input, shape index: {}]
  %s3 = inlined_call_operand.hbm [shape: bf16[128,128], index: 3, kind: input, shape index: {}]
  %s4 = inlined_call_operand.vmem [shape: f32[8,128], index: 4, kind: input, shape index: {}]
  %s5 = inlined_call_operand.vmem [shape: f32[16,128], index: 5, kind: output, shape index: {}]
  %s6 = sld [smem:[#allocation0]]
  $region38: #{get_action_and_value.1} parent=0
    _
  %s8 = ssub.s32 1, %s6
  %s9 = scalar_select 0, %s8, %s6
  $region1: #{get_action_and_value.1} parent=0
    #allocation2 [shape = 'u8[32768]{0}', space=vmem, size = 0x8000, scoped, tag = 'input window, operand 2, single buffered']
    #allocation3 [shape = 's32[1]{0}', space=sflag, size = 0x4, scoped, tag = 'scoped memory for get_action_and_value.1']
    #allocation4 [shape = 'u8[32768]{0}', space=vmem, size = 0x8000, scoped, tag = 'input window, operand 3, single buffered']
    #allocation5 [shape = 's32[1]{0}', space=sflag, size = 0x4, scoped, tag = 'scoped memory for get_action_and_value.1']
    %10 = vsyncpa [#allocation3], 0
    %11 = vsyncpa [#allocation5], 0
    // Predicated region
    $region2: #{get_action_and_value.1} parent=1 // pred_check
      _
    $region3: #{get_action_and_value.1} parent=1 // pred_check_branch
      %13 = sbr.rel (0) target = $region5
    $region4: #{get_action_and_value.1} parent=1 // pred_region
      _
    $region5: #{get_action_and_value.1} parent=1 // pred_fallthru
      _
    // Predicated region
    $region6: #{get_action_and_value.1} parent=1 // pred_check
      _
    $region7: #{get_action_and_value.1} parent=1 // pred_check_branch
      %15 = sbr.rel (0) target = $region9
    $region8: #{get_action_and_value.1} parent=1 // pred_region
      _
    $region9: #{get_action_and_value.1} parent=1 // pred_fallthru
      _
    // Predicated region
    $region10: #{get_action_and_value.1} parent=1 // pred_check
      _
    $region11: #{get_action_and_value.1} parent=1 // pred_check_branch
      %17 = sbr.rel (0) target = $region13
    $region12: #{get_action_and_value.1} parent=1 // pred_region
      %s19 = ssub.s32 1024, 1024
      %20 = vsyncadd [#allocation3], %s19
      %s21 = sshll.u32 [#allocation2], 4
      %s22 = int_to_ptr.vmem [resolvable:$true] %s21
      %27 = dma.hbm_to_vmem [thread:$0]  %s2, 1024, %s22, [#allocation3], 64, 64, 4
    $region13: #{get_action_and_value.1} parent=1 // pred_fallthru
      _
    // Predicated region
    $region14: #{get_action_and_value.1} parent=1 // pred_check
      _
    $region15: #{get_action_and_value.1} parent=1 // pred_check_branch
      %29 = sbr.rel (0) target = $region17
    $region16: #{get_action_and_value.1} parent=1 // pred_region
      %s31 = ssub.s32 1024, 1024
      %32 = vsyncadd [#allocation5], %s31
      %s33 = sshll.u32 [#allocation4], 4
      %s34 = int_to_ptr.vmem [resolvable:$true] %s33
      %39 = dma.hbm_to_vmem [thread:$0]  %s3, 1024, %s34, [#allocation5], 64, 64, 4
    $region17: #{get_action_and_value.1} parent=1 // pred_fallthru
      _
    // Predicated region
    $region18: #{get_action_and_value.1} parent=1 // pred_check
      _
    $region19: #{get_action_and_value.1} parent=1 // pred_check_branch
      %41 = sbr.rel (0) target = $region21
    $region20: #{get_action_and_value.1} parent=1 // pred_region
      _
    $region21: #{get_action_and_value.1} parent=1 // pred_fallthru
      _
    // Predicated region
    $region22: #{get_action_and_value.1} parent=1 // pred_check
      _
    $region23: #{get_action_and_value.1} parent=1 // pred_check_branch
      %43 = sbr.rel (0) target = $region25
    $region24: #{get_action_and_value.1} parent=1 // pred_region
      %44 = dma.done [#allocation3], 1024
    $region25: #{get_action_and_value.1} parent=1 // pred_fallthru
      _
    // Predicated region
    $region26: #{get_action_and_value.1} parent=1 // pred_check
      _
    $region27: #{get_action_and_value.1} parent=1 // pred_check_branch
      %46 = sbr.rel (0) target = $region29
    $region28: #{get_action_and_value.1} parent=1 // pred_region
      %47 = dma.done [#allocation5], 1024
    $region29: #{get_action_and_value.1} parent=1 // pred_fallthru
      _
    %v49 = vld [vmem:[%s4] sm:$0xff]
    %v50 = vld [vmem:[%s0] sm:$0xf]
    %v51 = vld [vmem:[%s0 + $0x4] sm:$0xf]
    %v52 = vld [vmem:[%s1] sm:$0xf]
    %v53 = vlaneseq
    %v54 = vshrl.u32 %v53, 7
    %v55 = vsub.s32 0, %v54
    %v56 = vrot.slane %v49, %v55
    %v59 = vunpack.c.l.b16 %v50
    %v60 = vunpack.c.l.b16 %v51
    %v61 = vpack.c.b16 %v60, %v59
    %vm62 = vcmask 64512
    %v64 = vsel %vm62, %v61, 0
    %vm66 = vcmask 1043456
    %v68 = vsel %vm66, %v52, 0
    %70 = vmatprep.subr.bf16.mxu0 0
    %71 = vmatpush1.bf16.msra.mxu0 %v68
    %72 = vmatprep.subr.bf16.mxu0 0
    %73 = vmatpush1.bf16.msra.mxu0 0
    %74 = vmatprep.subr.bf16.mxu0 0
    %75 = vmatpush1.bf16.msra.mxu0 0
    %76 = vmatprep.subr.bf16.mxu0 0
    %77 = vmatpush1.bf16.msra.mxu0 0
    %78 = vmatprep.subr.bf16.mxu0 0
    %79 = vmatpush1.bf16.msra.mxu0 0
    %80 = vmatprep.subr.bf16.mxu0 0
    %81 = vmatpush1.bf16.msra.mxu0 0
    %82 = vmatprep.subr.bf16.mxu0 0
    %83 = vmatpush1.bf16.msra.mxu0 0
    %84 = vmatprep.subr.bf16.mxu0 0
    %85 = vmatpush1.bf16.msra.mxu0 0
    %86 = vmatprep.subr.bf16.mxu0 0
    %87 = vmatpush1.bf16.msra.mxu0 0
    %88 = vmatprep.subr.bf16.mxu0 0
    %89 = vmatpush1.bf16.msra.mxu0 0
    %90 = vmatprep.subr.bf16.mxu0 0
    %91 = vmatpush1.bf16.msra.mxu0 0
    %92 = vmatprep.subr.bf16.mxu0 0
    %93 = vmatpush1.bf16.msra.mxu0 0
    %94 = vmatprep.subr.bf16.mxu0 0
    %95 = vmatpush1.bf16.msra.mxu0 0
    %96 = vmatprep.subr.bf16.mxu0 0
    %97 = vmatpush1.bf16.msra.mxu0 0
    %98 = vmatprep.subr.bf16.mxu0 0
    %99 = vmatpush1.bf16.msra.mxu0 0
    %100 = vmatprep.subr.bf16.mxu0 0
    %101 = vmatpush1.bf16.msra.mxu0 0
    %102 = vmatprep.mubr.bf16.mxu0 0
    %103 = vmatmul.mubr.bf16.gmra.mrb[0].mxu0 %v64
    %v104 = vpop.f32.mrb[0].mxu0
    %v105 = vadd.f32 %v56, %v104
    %v106 = vpop.f32.mrb[0].mxu0
    %v107 = vpop.f32.mrb[0].mxu0
    %v108 = vadd.f32 %v56, %v107
    %v109 = vpop.f32.mrb[0].mxu0
    %110 = vdwg.mxu0
    %v111 = vmax.f32 %v105, 0.0
    %v112 = vmax.f32 %v108, 0.0
    %v113 = vpack.c.bf16 %v112, %v111
    %v114 = vld [vmem:[#allocation2] sm:$0xf]
    %v115 = vld [vmem:[#allocation2 + $0x4] sm:$0xf]
    %v116 = vld [vmem:[#allocation2 + $0x8] sm:$0xf]
    %v117 = vld [vmem:[#allocation2 + $0xc] sm:$0xf]
    %v118 = vld [vmem:[#allocation2 + $0x10] sm:$0xf]
    %v119 = vld [vmem:[#allocation2 + $0x14] sm:$0xf]
    %v120 = vld [vmem:[#allocation2 + $0x18] sm:$0xf]
    %v121 = vld [vmem:[#allocation2 + $0x1c] sm:$0xf]
    %v122 = vld [vmem:[#allocation2 + $0x20] sm:$0xf]
    %v123 = vld [vmem:[#allocation2 + $0x24] sm:$0xf]
    %v124 = vld [vmem:[#allocation2 + $0x28] sm:$0xf]
    %v125 = vld [vmem:[#allocation2 + $0x2c] sm:$0xf]
    %v126 = vld [vmem:[#allocation2 + $0x30] sm:$0xf]
    %v127 = vld [vmem:[#allocation2 + $0x34] sm:$0xf]
    %v128 = vld [vmem:[#allocation2 + $0x38] sm:$0xf]
    %v129 = vld [vmem:[#allocation2 + $0x3c] sm:$0xf]
    %v130 = vlaneseq
    %v131 = vshrl.u32 %v130, 7
    %v132 = vsub.s32 1, %v131
    %v133 = vrot.slane %v49, %v132
    %v150 = vunpack.c.l.b16 %v114
    %v151 = vunpack.c.l.b16 %v115
    %v152 = vunpack.c.l.b16 %v116
    %v153 = vunpack.c.l.b16 %v117
    %v154 = vunpack.c.l.b16 %v118
    %v155 = vunpack.c.l.b16 %v119
    %v156 = vunpack.c.l.b16 %v120
    %v157 = vunpack.c.l.b16 %v121
    %v158 = vunpack.c.l.b16 %v122
    %v159 = vunpack.c.l.b16 %v123
    %v160 = vunpack.c.l.b16 %v124
    %v161 = vunpack.c.l.b16 %v125
    %v162 = vunpack.c.l.b16 %v126
    %v163 = vunpack.c.l.b16 %v127
    %v164 = vunpack.c.l.b16 %v128
    %v165 = vunpack.c.l.b16 %v129
    %v166 = vpack.c.b16 %v151, %v150
    %v167 = vpack.c.b16 %v153, %v152
    %v168 = vpack.c.b16 %v155, %v154
    %v169 = vpack.c.b16 %v157, %v156
    %v170 = vpack.c.b16 %v159, %v158
    %v171 = vpack.c.b16 %v161, %v160
    %v172 = vpack.c.b16 %v163, %v162
    %v173 = vpack.c.b16 %v165, %v164
    %182 = vmatprep.subr.bf16.mxu0 0
    %183 = vmatpush1.bf16.msra.mxu0 %v166
    %184 = vmatprep.subr.bf16.mxu0 0
    %185 = vmatpush1.bf16.msra.mxu0 %v167
    %186 = vmatprep.subr.bf16.mxu0 0
    %187 = vmatpush1.bf16.msra.mxu0 %v168
    %188 = vmatprep.subr.bf16.mxu0 0
    %189 = vmatpush1.bf16.msra.mxu0 %v169
    %190 = vmatprep.subr.bf16.mxu0 0
    %191 = vmatpush1.bf16.msra.mxu0 %v170
    %192 = vmatprep.subr.bf16.mxu0 0
    %193 = vmatpush1.bf16.msra.mxu0 %v171
    %194 = vmatprep.subr.bf16.mxu0 0
    %195 = vmatpush1.bf16.msra.mxu0 %v172
    %196 = vmatprep.subr.bf16.mxu0 0
    %197 = vmatpush1.bf16.msra.mxu0 %v173
    %198 = vmatprep.subr.bf16.mxu0 0
    %199 = vmatpush1.bf16.msra.mxu0 0
    %200 = vmatprep.subr.bf16.mxu0 0
    %201 = vmatpush1.bf16.msra.mxu0 0
    %202 = vmatprep.subr.bf16.mxu0 0
    %203 = vmatpush1.bf16.msra.mxu0 0
    %204 = vmatprep.subr.bf16.mxu0 0
    %205 = vmatpush1.bf16.msra.mxu0 0
    %206 = vmatprep.subr.bf16.mxu0 0
    %207 = vmatpush1.bf16.msra.mxu0 0
    %208 = vmatprep.subr.bf16.mxu0 0
    %209 = vmatpush1.bf16.msra.mxu0 0
    %210 = vmatprep.subr.bf16.mxu0 0
    %211 = vmatpush1.bf16.msra.mxu0 0
    %212 = vmatprep.subr.bf16.mxu0 0
    %213 = vmatpush1.bf16.msra.mxu0 0
    %214 = vmatprep.mubr.bf16.mxu0 0
    %215 = vmatmul.mubr.bf16.gmra.mrb[0].mxu0 %v113
    %v216 = vpop.f32.mrb[0].mxu0
    %v217 = vadd.f32 %v133, %v216
    %v218 = vpop.f32.mrb[0].mxu0
    %v219 = vpop.f32.mrb[0].mxu0
    %v220 = vadd.f32 %v133, %v219
    %v221 = vpop.f32.mrb[0].mxu0
    %222 = vdwg.mxu0
    %v223 = vmax.f32 %v217, 0.0
    %v224 = vmax.f32 %v220, 0.0
    %v225 = vpack.c.bf16 %v224, %v223
    %v226 = vld [vmem:[#allocation4] sm:$0xf]
    %v227 = vld [vmem:[#allocation4 + $0x4] sm:$0xf]
    %v228 = vld [vmem:[#allocation4 + $0x8] sm:$0xf]
    %v229 = vld [vmem:[#allocation4 + $0xc] sm:$0xf]
    %v230 = vld [vmem:[#allocation4 + $0x10] sm:$0xf]
    %v231 = vld [vmem:[#allocation4 + $0x14] sm:$0xf]
    %v232 = vld [vmem:[#allocation4 + $0x18] sm:$0xf]
    %v233 = vld [vmem:[#allocation4 + $0x1c] sm:$0xf]
    %v234 = vld [vmem:[#allocation4 + $0x20] sm:$0xf]
    %v235 = vld [vmem:[#allocation4 + $0x24] sm:$0xf]
    %v236 = vld [vmem:[#allocation4 + $0x28] sm:$0xf]
    %v237 = vld [vmem:[#allocation4 + $0x2c] sm:$0xf]
    %v238 = vld [vmem:[#allocation4 + $0x30] sm:$0xf]
    %v239 = vld [vmem:[#allocation4 + $0x34] sm:$0xf]
    %v240 = vld [vmem:[#allocation4 + $0x38] sm:$0xf]
    %v241 = vld [vmem:[#allocation4 + $0x3c] sm:$0xf]
    %v242 = vlaneseq
    %v243 = vshrl.u32 %v242, 7
    %v244 = vsub.s32 2, %v243
    %v245 = vrot.slane %v49, %v244
    %v262 = vunpack.c.l.b16 %v226
    %v263 = vunpack.c.l.b16 %v227
    %v264 = vunpack.c.l.b16 %v228
    %v265 = vunpack.c.l.b16 %v229
    %v266 = vunpack.c.l.b16 %v230
    %v267 = vunpack.c.l.b16 %v231
    %v268 = vunpack.c.l.b16 %v232
    %v269 = vunpack.c.l.b16 %v233
    %v270 = vunpack.c.l.b16 %v234
    %v271 = vunpack.c.l.b16 %v235
    %v272 = vunpack.c.l.b16 %v236
    %v273 = vunpack.c.l.b16 %v237
    %v274 = vunpack.c.l.b16 %v238
    %v275 = vunpack.c.l.b16 %v239
    %v276 = vunpack.c.l.b16 %v240
    %v277 = vunpack.c.l.b16 %v241
    %v278 = vpack.c.b16 %v263, %v262
    %v279 = vpack.c.b16 %v265, %v264
    %v280 = vpack.c.b16 %v267, %v266
    %v281 = vpack.c.b16 %v269, %v268
    %v282 = vpack.c.b16 %v271, %v270
    %v283 = vpack.c.b16 %v273, %v272
    %v284 = vpack.c.b16 %v275, %v274
    %v285 = vpack.c.b16 %v277, %v276
    %294 = vmatprep.subr.bf16.mxu0 0
    %295 = vmatpush1.bf16.msra.mxu0 %v278
    %296 = vmatprep.subr.bf16.mxu0 0
    %297 = vmatpush1.bf16.msra.mxu0 %v279
    %298 = vmatprep.subr.bf16.mxu0 0
    %299 = vmatpush1.bf16.msra.mxu0 %v280
    %300 = vmatprep.subr.bf16.mxu0 0
    %301 = vmatpush1.bf16.msra.mxu0 %v281
    %302 = vmatprep.subr.bf16.mxu0 0
    %303 = vmatpush1.bf16.msra.mxu0 %v282
    %304 = vmatprep.subr.bf16.mxu0 0
    %305 = vmatpush1.bf16.msra.mxu0 %v283
    %306 = vmatprep.subr.bf16.mxu0 0
    %307 = vmatpush1.bf16.msra.mxu0 %v284
    %308 = vmatprep.subr.bf16.mxu0 0
    %309 = vmatpush1.bf16.msra.mxu0 %v285
    %310 = vmatprep.subr.bf16.mxu0 0
    %311 = vmatpush1.bf16.msra.mxu0 0
    %312 = vmatprep.subr.bf16.mxu0 0
    %313 = vmatpush1.bf16.msra.mxu0 0
    %314 = vmatprep.subr.bf16.mxu0 0
    %315 = vmatpush1.bf16.msra.mxu0 0
    %316 = vmatprep.subr.bf16.mxu0 0
    %317 = vmatpush1.bf16.msra.mxu0 0
    %318 = vmatprep.subr.bf16.mxu0 0
    %319 = vmatpush1.bf16.msra.mxu0 0
    %320 = vmatprep.subr.bf16.mxu0 0
    %321 = vmatpush1.bf16.msra.mxu0 0
    %322 = vmatprep.subr.bf16.mxu0 0
    %323 = vmatpush1.bf16.msra.mxu0 0
    %324 = vmatprep.subr.bf16.mxu0 0
    %325 = vmatpush1.bf16.msra.mxu0 0
    %326 = vmatprep.mubr.bf16.mxu0 0
    %327 = vmatmul.mubr.bf16.gmra.mrb[0].mxu0 %v225
    %v328 = vpop.f32.mrb[0].mxu0
    %v329 = vadd.f32 %v245, %v328
    %v330 = vpop.f32.mrb[0].mxu0
    %v331 = vpop.f32.mrb[0].mxu0
    %v332 = vadd.f32 %v245, %v331
    %v333 = vpop.f32.mrb[0].mxu0
    %334 = vdwg.mxu0
    %v335 = vlaneseq
    %v336 = vand.u32 %v335, 127
    %vm337 = vcmp.lt.s32.totalorder %v336, 2
    %v338 = vsel %vm337, %v329, -1e+30
    %v339 = vsel %vm337, %v332, -1e+30
    %340 = vmax.xlane.f32.xlu0 %v338
    %v341 = vpop.xlane.xlu0 %340
    %342 = vmax.xlane.f32.xlu0 %v339
    %v343 = vpop.xlane.xlu0 %342
    %v344 = vsub.f32 %v338, %v341
    %v345 = vsub.f32 %v339, %v343
    %v346 = vmul.f32 %v344, 1.442695
    %v347 = vpow.pop %v346
    %v348 = vmul.f32 %v345, 1.442695
    %v349 = vpow.pop %v348
    %v350 = vsel %vm337, %v347, 0.0
    %v351 = vsel %vm337, %v349, 0.0
    %352 = vadd.xlane.f32.xlu0 %v350
    %v353 = vpop.xlane.xlu0 %352
    %354 = vadd.xlane.f32.xlu0 %v351
    %v355 = vpop.xlane.xlu0 %354
    %v356 = vlog2.pop %v353
    %v357 = vmul.f32 %v356, 0.6931472
    %v358 = vlog2.pop %v355
    %v359 = vmul.f32 %v358, 0.6931472
    %v360 = vadd.f32 %v341, %v357
    %v361 = vadd.f32 %v343, %v359
    %v362 = vrcp.pop %v353
    %v363 = vrcp.pop %v355
    %v364 = vmul.f32 %v350, %v362
    %v365 = vmul.f32 %v351, %v363
    %v366 = vsub.f32 %v344, %v357
    %v367 = vsub.f32 %v345, %v359
    %v368 = vmul.f32 %v364, %v366
    %v369 = vmul.f32 %v365, %v367
    %v370 = vsel %vm337, %v368, 0.0
    %v371 = vsel %vm337, %v369, 0.0
    %372 = vadd.xlane.f32.xlu0 %v370
    %v373 = vpop.xlane.xlu0 %372
    %374 = vadd.xlane.f32.xlu0 %v371
    %v375 = vpop.xlane.xlu0 %374
    %v376 = vsub.f32 0.0, %v373
    %v377 = vsub.f32 0.0, %v375
    %vm378 = vcmp.eq.s32.totalorder %v336, 125
    %v379 = vsel %vm378, %v360, %v329
    %v380 = vsel %vm378, %v361, %v332
    %vm381 = vcmp.eq.s32.totalorder %v336, 126
    %v382 = vsel %vm381, %v376, %v379
    %v383 = vsel %vm381, %v377, %v380
    %384 = vst [vmem:[%s5] sm:$0xff] %v382
    %385 = vst [vmem:[%s5 + $0x8] sm:$0xff] %v383
    // Predicated region
    $region30: #{get_action_and_value.1} parent=1 // pred_check
      _
    $region31: #{get_action_and_value.1} parent=1 // pred_check_branch
      %387 = sbr.rel (0) target = $region33
    $region32: #{get_action_and_value.1} parent=1 // pred_region
      _
    $region33: #{get_action_and_value.1} parent=1 // pred_fallthru
      _
    // Predicated region
    $region34: #{get_action_and_value.1} parent=1 // pred_check
      _
    $region35: #{get_action_and_value.1} parent=1 // pred_check_branch
      %389 = sbr.rel (0) target = $region37
    $region36: #{get_action_and_value.1} parent=1 // pred_region
      _
    $region37: #{get_action_and_value.1} parent=1 // pred_fallthru
      _
    %390 = vsyncpa [#allocation3], 1
    %391 = vsyncpa [#allocation5], 1

</llo_original>
